<compile_context>
chip_gen: v6e
topology: v6e:2x2x1
jax: 0.10.0
libtpu: 0.0.40
codegen_flags: <defaults>
</compile_context>

<pallas_src>
import functools

import jax
import jax.numpy as jnp
from jax.experimental import pallas as pl
from jax.experimental.pallas import tpu as pltpu


def _round_up(a, b):
    return (a + b - 1) // b * b


def gcn_score_kernel(w_ref, b_ref, xt_ref, at_ref, out_ref, acc_ref):
    # w_ref  : [1, C]            f32   (W^T, lane-dense)
    # b_ref  : [1, 1]            f32   (SMEM scalar)
    # xt_ref : [C, tile_k]       f32   (X^T chunk for reduction tile k)
    # at_ref : [tile_k, tile_j]  bf16/f32 (A_hat^T tile)
    # out_ref: [1, tile_j]       f32   (score^T chunk, lane-dense)
    # acc_ref: [1, tile_j]       f32   VMEM scratch accumulator
    k = pl.program_id(1)

    @pl.when(k == 0)
    def _():
        acc_ref[...] = jnp.zeros_like(acc_ref)

    # Projection first: xw[k_block] = W^T @ X^T[:, k_block]  -> [1, tile_k]
    xw = jnp.dot(w_ref[...], xt_ref[...], preferred_element_type=jnp.float32)
    # Adjacency matvec chunk: score^T[j_block] += xw @ A_hat^T[k_block, j_block]
    acc_ref[...] += jnp.dot(
        xw.astype(at_ref.dtype), at_ref[...], preferred_element_type=jnp.float32
    )

    @pl.when(k == pl.num_programs(1) - 1)
    def _():
        out_ref[...] = acc_ref[...] + b_ref[0, 0]


def attention_score_forward(x, edge_index, weight, bias, *, adj_dtype=jnp.bfloat16):
    """score = GCNConv(in_channels, 1)(x, edge_index) with default PyG gcn_norm."""
    n, c = x.shape
    src = edge_index[0]
    tgt = edge_index[1]

    # Build A_hat^T directly (a_hat_t[p, q] = A_hat[q, p]); messages flow src -> tgt,
    # so adj[tgt, src] = 1  <=>  adj_t[src, tgt] = 1.
    adj_t = jnp.zeros((n, n), dtype=jnp.float32).at[src, tgt].set(1.0)
    diag = jnp.arange(n)
    adj_t = adj_t.at[diag, diag].set(1.0)  # self-loops (add_self_loops=True)

    # deg[i] = in-degree incl. self-loop = column sum of adj_t.
    deg = jnp.sum(adj_t, axis=0)
    dinv = jnp.where(deg > 0, 1.0 / jnp.sqrt(deg), 0.0)
    a_hat_t = dinv[:, None] * adj_t * dinv[None, :]

    # Tiling: MXU-aligned (256/512 multiples), padded with zeros (padded rows/cols
    # contribute nothing; padded output columns are sliced off).
    tile = min(512, _round_up(max(n, 1), 256))
    n_pad = _round_up(n, tile)
    pad = n_pad - n

    a_hat_t = jnp.pad(a_hat_t, ((0, pad), (0, pad))).astype(adj_dtype)
    xt = jnp.pad(x.astype(jnp.float32).T, ((0, 0), (0, pad)))          # [C, N_pad]
    w_row = weight.astype(jnp.float32).reshape(1, c)                   # [1, C] (W^T)
    b = jnp.asarray(bias, jnp.float32).reshape(1, 1)                   # SMEM scalar

    adj_bytes = jnp.dtype(adj_dtype).itemsize
    # Double-buffered A_hat tile + X^T tile + out/acc + W, with headroom.
    vmem_need = (2 * tile * tile * adj_bytes + 2 * c * tile * 4
                 + 4 * tile * 4 + 2 * c * 4)
    vmem_limit = min(max(2 * vmem_need, 16 * 1024 * 1024), 48 * 1024 * 1024)

    grid = (n_pad // tile, n_pad // tile)  # (output-column tiles, reduction tiles)

    out = pl.pallas_call(
        gcn_score_kernel,
        out_shape=jax.ShapeDtypeStruct((1, n_pad), jnp.float32),
        grid_spec=pltpu.PrefetchScalarGridSpec(
            num_scalar_prefetch=0,
            grid=grid,
            in_specs=[
                pl.BlockSpec((1, c), lambda j, k: (0, 0)),              # W^T  [1, C]
                pl.BlockSpec(memory_space=pltpu.MemorySpace.SMEM),      # bias [1, 1]
                pl.BlockSpec((c, tile), lambda j, k: (0, k)),           # X^T  chunk
                pl.BlockSpec((tile, tile), lambda j, k: (k, j)),        # A_hat^T tile
            ],
            out_specs=pl.BlockSpec((1, tile), lambda j, k: (0, j)),     # score^T tile
            scratch_shapes=[pltpu.VMEM((1, tile), jnp.float32)],
        ),
        compiler_params=pltpu.CompilerParams(
            dimension_semantics=("parallel", "arbitrary"),
            vmem_limit_bytes=vmem_limit,
        ),
        cost_estimate=pl.CostEstimate(
            flops=2 * n_pad * n_pad + 2 * n_pad * c,
            transcendentals=0,
            bytes_accessed=n_pad * n_pad * adj_bytes + n_pad * c * 4 + n_pad * 4,
        ),
    )(w_row, b, xt, a_hat_t)

    return out[0, :n].reshape(n, 1)


def reference_forward(x, edge_index, weight, bias):
    # Pure-JAX (f32, dense) reference of the same GCNConv math for a sanity check.
    n = x.shape[0]
    src, tgt = edge_index[0], edge_index[1]
    adj = jnp.zeros((n, n), dtype=jnp.float32).at[tgt, src].set(1.0)
    diag = jnp.arange(n)
    adj = adj.at[diag, diag].set(1.0)
    deg = jnp.sum(adj, axis=1)
    dinv = jnp.where(deg > 0, 1.0 / jnp.sqrt(deg), 0.0)
    a_hat = dinv[:, None] * adj * dinv[None, :]
    return a_hat @ (x @ weight) + bias


if __name__ == "__main__":
    key = jax.random.PRNGKey(0)
    k_x, k_e, k_w = jax.random.split(key, 3)

    N = 16          # number of graph nodes
    C = 32          # in_channels
    E = 40          # number of directed edges

    # Node features [N, C].
    x = jax.random.normal(k_x, (N, C), dtype=jnp.float32)

    # Random directed edge_index [2, E] (source row 0, target row 1).
    edge_index = jax.random.randint(k_e, (2, E), 0, N, dtype=jnp.int32)

    # Deterministic parameter init (GCNConv: glorot weight [C, 1], zero bias).
    limit = (6.0 / (C + 1)) ** 0.5
    weight = jax.random.uniform(k_w, (C, 1), minval=-limit, maxval=limit,
                                dtype=jnp.float32)
    bias = jnp.zeros((1, 1), dtype=jnp.float32)

    ref = reference_forward(x, edge_index, weight, bias)

    # Full-precision adjacency path: must match the f32 reference tightly.
    score_f32 = attention_score_forward(x, edge_index, weight, bias,
                                        adj_dtype=jnp.float32)
    jax.block_until_ready(score_f32)
    assert score_f32.shape == (N, 1)
    assert jnp.allclose(score_f32, ref, atol=1e-4, rtol=1e-4)

    # Default bf16-adjacency path (bandwidth-optimized): looser tolerance for the
    # bf16 quantization of A_hat / xw (accumulation is still f32).
    score_bf16 = attention_score_forward(x, edge_index, weight, bias)
    jax.block_until_ready(score_bf16)
    assert score_bf16.shape == (N, 1)
    assert jnp.allclose(score_bf16, ref, atol=5e-2, rtol=5e-2)

    print("KERNEL_OK")
</pallas_src>

<mosaic_0001>
module attributes {stable_mosaic.version = 11 : i64} {
  func.func @gcn_score_kernel(%arg0: i32, %arg1: i32, %arg2: memref<1x32xf32, #tpu.memory_space<vmem>>, %arg3: memref<1x1xf32, #tpu.memory_space<smem>>, %arg4: memref<32x256xf32, #tpu.memory_space<vmem>>, %arg5: memref<256x256xf32, #tpu.memory_space<vmem>>, %arg6: memref<1x256xf32, #tpu.memory_space<vmem>>, %arg7: memref<1x256xf32, #tpu.memory_space<vmem>>) attributes {dimension_semantics = [#tpu.dimension_semantics<parallel>, #tpu.dimension_semantics<arbitrary>], iteration_bounds = array<i64: 1, 1>, scalar_prefetch = 0 : i64, scratch_operands = 1 : i64, tpu.core_type = #tpu.core_type<tc>, window_params = [{pipeline_mode = #tpu.pipeline_mode<synchronous>, transform_indices = @transform_0, window_bounds = array<i64: 1, 32>}, {transform_indices = @transform_1, window_bounds = array<i64: 1, 1>}, {transform_indices = @transform_2, window_bounds = array<i64: 32, 256>}, {transform_indices = @transform_3, window_bounds = array<i64: 256, 256>}, {transform_indices = @transform_4, window_bounds = array<i64: 1, 256>}]} {
    %c0_i32 = arith.constant 0 : i32
    %0 = arith.cmpi eq, %arg1, %c0_i32 : i32
    %1 = arith.extui %0 : i1 to i32
    %c0_i32_0 = arith.constant 0 : i32
    %2 = arith.cmpi ne, %1, %c0_i32_0 : i32
    scf.if %2 {
      %cst_13 = arith.constant 0.000000e+00 : f32
      %14 = vector.broadcast %cst_13 : f32 to vector<1x256xf32>
      %c0_14 = arith.constant 0 : index
      %c0_15 = arith.constant 0 : index
      %15 = vector.load %arg7[%c0_14, %c0_15] : memref<1x256xf32, #tpu.memory_space<vmem>>, vector<1x256xf32>
      tpu.vector_store %arg7[%c0_14, %c0_15], %14 {strides = array<i32>} : memref<1x256xf32, #tpu.memory_space<vmem>>, vector<1x256xf32>,
    } else {
    }
    %c0 = arith.constant 0 : index
    %c0_1 = arith.constant 0 : index
    %3 = vector.load %arg2[%c0, %c0_1] : memref<1x32xf32, #tpu.memory_space<vmem>>, vector<1x32xf32>
    %c0_2 = arith.constant 0 : index
    %c0_3 = arith.constant 0 : index
    %4 = vector.load %arg4[%c0_2, %c0_3] : memref<32x256xf32, #tpu.memory_space<vmem>>, vector<32x256xf32>
    %cst = arith.constant dense<0.000000e+00> : vector<1x256xf32>
    %5 = tpu.matmul %3, %4, %cst {dimension_numbers = #tpu.dot_dimension_numbers<[1], [0], [0], [1], [0, 0, 1, 1], [], []>} : vector<1x32xf32>, vector<32x256xf32>, vector<1x256xf32> -> vector<1x256xf32>
    %c0_4 = arith.constant 0 : index
    %c0_5 = arith.constant 0 : index
    %6 = vector.load %arg7[%c0_4, %c0_5] : memref<1x256xf32, #tpu.memory_space<vmem>>, vector<1x256xf32>
    %c0_6 = arith.constant 0 : index
    %c0_7 = arith.constant 0 : index
    %7 = vector.load %arg5[%c0_6, %c0_7] : memref<256x256xf32, #tpu.memory_space<vmem>>, vector<256x256xf32>
    %cst_8 = arith.constant dense<0.000000e+00> : vector<1x256xf32>
    %8 = tpu.matmul %5, %7, %cst_8 {dimension_numbers = #tpu.dot_dimension_numbers<[1], [0], [0], [1], [0, 0, 1, 1], [], []>} : vector<1x256xf32>, vector<256x256xf32>, vector<1x256xf32> -> vector<1x256xf32>
    %9 = arith.addf %6, %8 : vector<1x256xf32>
    %c0_9 = arith.constant 0 : index
    %c0_10 = arith.constant 0 : index
    %10 = vector.load %arg7[%c0_9, %c0_10] : memref<1x256xf32, #tpu.memory_space<vmem>>, vector<1x256xf32>
    tpu.vector_store %arg7[%c0_9, %c0_10], %9 {strides = array<i32>} : memref<1x256xf32, #tpu.memory_space<vmem>>, vector<1x256xf32>,
    %c0_i32_11 = arith.constant 0 : i32
    %11 = arith.cmpi eq, %arg1, %c0_i32_11 : i32
    %12 = arith.extui %11 : i1 to i32
    %c0_i32_12 = arith.constant 0 : i32
    %13 = arith.cmpi ne, %12, %c0_i32_12 : i32
    scf.if %13 {
      %c0_13 = arith.constant 0 : index
      %c0_14 = arith.constant 0 : index
      %14 = vector.load %arg7[%c0_13, %c0_14] : memref<1x256xf32, #tpu.memory_space<vmem>>, vector<1x256xf32>
      %c0_15 = arith.constant 0 : index
      %c0_16 = arith.constant 0 : index
      %15 = memref.load %arg3[%c0_15, %c0_16] : memref<1x1xf32, #tpu.memory_space<smem>>
      %16 = vector.broadcast %15 : f32 to vector<1x256xf32>
      %17 = arith.addf %14, %16 : vector<1x256xf32>
      %c0_17 = arith.constant 0 : index
      %c0_18 = arith.constant 0 : index
      %18 = vector.load %arg6[%c0_17, %c0_18] : memref<1x256xf32, #tpu.memory_space<vmem>>, vector<1x256xf32>
      tpu.vector_store %arg6[%c0_17, %c0_18], %17 {strides = array<i32>} : memref<1x256xf32, #tpu.memory_space<vmem>>, vector<1x256xf32>,
    } else {
    }
    return
  }
  func.func @transform_0(%arg0: i32, %arg1: i32) -> (i32, i32) {
    %c0_i32 = arith.constant 0 : i32
    %c0_i32_0 = arith.constant 0 : i32
    %c0_i32_1 = arith.constant 0 : i32
    return %c0_i32, %c0_i32_0 : i32, i32
  }
  func.func @transform_1(%arg0: i32, %arg1: i32) -> (i32, i32) {
    %c0_i32 = arith.constant 0 : i32
    %c0_i32_0 = arith.constant 0 : i32
    %c0_i32_1 = arith.constant 0 : i32
    return %c0_i32, %c0_i32_0 : i32, i32
  }
  func.func @transform_2(%arg0: i32, %arg1: i32) -> (i32, i32) {
    %c0_i32 = arith.constant 0 : i32
    %c0_i32_0 = arith.constant 0 : i32
    return %c0_i32, %arg1 : i32, i32
  }
  func.func @transform_3(%arg0: i32, %arg1: i32) -> (i32, i32) {
    %c0_i32 = arith.constant 0 : i32
    return %arg1, %arg0 : i32, i32
  }
  func.func @transform_4(%arg0: i32, %arg1: i32) -> (i32, i32) {
    %c0_i32 = arith.constant 0 : i32
    %c0_i32_0 = arith.constant 0 : i32
    return %c0_i32, %arg0 : i32, i32
  }
}

</mosaic_0001>

<llo_original>
// kernel: tpu_custom_call.1
$region0: #{tpu_custom_call.1}
  #allocation0 [shape = 'u32[]', space=smem, size = 0x4, offset = 0x4, fixed_abs, tag = 'smem constant byte address 0x4 - core index']
  #allocation1 [shape = 'u32[144,128]{1,0:T(1,128)}', space=vmem, size = 0x12000, scoped, tag = 'internal scratch']
  #allocation2 [shape = 'f32[1,256]{1,0:T(1,128)}', space=vmem, size = 0x400, scoped, tag = 'scratch operand']
  #allocation3 [shape = 'f32[1,1]{1,0:T(1,128)S(6)}', space=smem, size = 0x200, scoped, tag = 'scoped memory for tpu_custom_call.1']
  %s0 = inlined_call_operand.vmem [shape: f32[1,32], index: 0, kind: input, shape index: {}]
  %s1 = inlined_call_operand.<no memory space> [shape: f32[1,1], index: 1, kind: input, shape index: {}]
  %s2 = inlined_call_operand.hbm [shape: f32[32,256], index: 2, kind: input, shape index: {}]
  %s3 = inlined_call_operand.hbm [shape: f32[256,256], index: 3, kind: input, shape index: {}]
  %s4 = inlined_call_operand.hbm [shape: f32[1,256], index: 4, kind: output, shape index: {}]
  %s5 = sld [smem:[#allocation0]]
  $region42: #{tpu_custom_call.1} parent=0
    _
  %s7 = ssub.s32 1, %s5
  %s8 = scalar_select 0, %s7, %s5
  %9 = sst [smem:[#allocation3]] %s1
  $region1: #{tpu_custom_call.1} parent=0
    #allocation4 [shape = 'u8[32768]{0}', space=vmem, size = 0x8000, scoped, tag = 'input window, operand 2, single buffered']
    #allocation5 [shape = 's32[1]{0}', space=sflag, size = 0x4, scoped, tag = 'scoped memory for tpu_custom_call.1']
    #allocation6 [shape = 's32[1]{0}', space=sflag, size = 0x4, scoped, tag = 'scoped memory for tpu_custom_call.1']
    #allocation7 [shape = 'u8[262144]{0}', space=vmem, size = 0x40000, scoped, tag = 'input window, operand 3, single buffered']
    #allocation8 [shape = 's32[1]{0}', space=sflag, size = 0x4, scoped, tag = 'scoped memory for tpu_custom_call.1']
    #allocation9 [shape = 'u8[1024]{0}', space=vmem, size = 0x400, scoped, tag = 'output window, operand 0, single buffered']
    %10 = vsyncpa [#allocation5], 0
    %11 = vsyncpa [#allocation8], 0
    %12 = vsyncpa [#allocation6], 0
    // Predicated region
    $region2: #{tpu_custom_call.1} parent=1 // pred_check
      _
    $region3: #{tpu_custom_call.1} parent=1 // pred_check_branch
      %14 = sbr.rel (0) target = $region5
    $region4: #{tpu_custom_call.1} parent=1 // pred_region
      _
    $region5: #{tpu_custom_call.1} parent=1 // pred_fallthru
      _
    // Predicated region
    $region6: #{tpu_custom_call.1} parent=1 // pred_check
      _
    $region7: #{tpu_custom_call.1} parent=1 // pred_check_branch
      %16 = sbr.rel (0) target = $region9
    $region8: #{tpu_custom_call.1} parent=1 // pred_region
      _
    $region9: #{tpu_custom_call.1} parent=1 // pred_fallthru
      _
    // Predicated region
    $region10: #{tpu_custom_call.1} parent=1 // pred_check
      _
    $region11: #{tpu_custom_call.1} parent=1 // pred_check_branch
      %18 = sbr.rel (0) target = $region13
    $region12: #{tpu_custom_call.1} parent=1 // pred_region
      %s20 = ssub.s32 1024, 1024
      %21 = vsyncadd [#allocation5], %s20
      %s22 = sshll.u32 [#allocation4], 4
      %s23 = int_to_ptr.vmem [resolvable:$true] %s22
      %28 = dma.hbm_to_vmem [thread:$0]  %s2, 1024, %s23, [#allocation5], 256, 256, 16
    $region13: #{tpu_custom_call.1} parent=1 // pred_fallthru
      _
    // Predicated region
    $region14: #{tpu_custom_call.1} parent=1 // pred_check
      _
    $region15: #{tpu_custom_call.1} parent=1 // pred_check_branch
      %30 = sbr.rel (0) target = $region17
    $region16: #{tpu_custom_call.1} parent=1 // pred_region
      %s32 = ssub.s32 8192, 8192
      %33 = vsyncadd [#allocation8], %s32
      %s34 = sshll.u32 [#allocation7], 4
      %s35 = int_to_ptr.vmem [resolvable:$true] %s34
      %40 = dma.hbm_to_vmem [thread:$0]  %s3, 8192, %s35, [#allocation8], 256, 256, 16
    $region17: #{tpu_custom_call.1} parent=1 // pred_fallthru
      _
    // Predicated region
    $region18: #{tpu_custom_call.1} parent=1 // pred_check
      _
    $region19: #{tpu_custom_call.1} parent=1 // pred_check_branch
      %42 = sbr.rel (0) target = $region21
    $region20: #{tpu_custom_call.1} parent=1 // pred_region
      %43 = dma.done [#allocation5], 1024
    $region21: #{tpu_custom_call.1} parent=1 // pred_fallthru
      _
    // Predicated region
    $region22: #{tpu_custom_call.1} parent=1 // pred_check
      _
    $region23: #{tpu_custom_call.1} parent=1 // pred_check_branch
      %45 = sbr.rel (0) target = $region25
    $region24: #{tpu_custom_call.1} parent=1 // pred_region
      %46 = dma.done [#allocation8], 8192
    $region25: #{tpu_custom_call.1} parent=1 // pred_fallthru
      _
    %p47 = scmp.eq.s32.totalorder 0, 0
    // Predicated region
    $region26: #{tpu_custom_call.1} parent=1 // pred_check
      %p48 = pneg %p47
    $region27: #{tpu_custom_call.1} parent=1 // pred_check_branch
      %50 = sbr.rel (%p48) target = $region29
    $region28: #{tpu_custom_call.1} parent=1 // pred_region
      %v51 = vlaneseq
      %vm52 = vcmp.ge.s32.totalorder %v51, 0
      %vm53 = vcmp.lt.s32.totalorder %v51, 256
      %vm54 = vmand %vm52, %vm53
      %55 = vst.msk [vmem:[#allocation2] sm:$0x3] %vm54, 0.0
    $region29: #{tpu_custom_call.1} parent=1 // pred_fallthru
      _
    %v56 = vld [vmem:[%s0] sm:$0x1]
    %v57 = vld [vmem:[#allocation4] sm:$0xff]
    %v58 = vld [vmem:[#allocation4 + $0x8] sm:$0xff]
    %v59 = vld [vmem:[#allocation4 + $0x10] sm:$0xff]
    %v60 = vld [vmem:[#allocation4 + $0x18] sm:$0xff]
    %v61 = vld [vmem:[#allocation4 + $0x20] sm:$0xff]
    %v62 = vld [vmem:[#allocation4 + $0x28] sm:$0xff]
    %v63 = vld [vmem:[#allocation4 + $0x30] sm:$0xff]
    %v64 = vld [vmem:[#allocation4 + $0x38] sm:$0xff]
    %vm65 = vcmask 261120
    %v67 = vsel %vm65, %v56, 0
    %69 = vmatprep.subr.mxu0 0.0
    %70 = vmatpush1.msra.mxu0 0.0
    %71 = vmatprep.subr.mxu0 0.0
    %72 = vmatpush1.msra.mxu0 0.0
    %73 = vmatprep.subr.mxu0 0.0
    %74 = vmatpush1.msra.mxu0 0.0
    %75 = vmatprep.subr.mxu0 0.0
    %76 = vmatpush1.msra.mxu0 0.0
    %77 = vmatprep.subr.mxu0 0.0
    %78 = vmatpush1.msra.mxu0 0.0
    %79 = vmatprep.subr.mxu0 0.0
    %80 = vmatpush1.msra.mxu0 0.0
    %81 = vmatprep.subr.mxu0 0.0
    %82 = vmatpush1.msra.mxu0 0.0
    %83 = vmatprep.subr.mxu0 0.0
    %84 = vmatpush1.msra.mxu0 0.0
    %85 = vmatprep.subr.mxu0 0.0
    %86 = vmatpush1.msra.mxu0 0.0
    %87 = vmatprep.subr.mxu0 0.0
    %88 = vmatpush1.msra.mxu0 0.0
    %89 = vmatprep.subr.mxu0 0.0
    %90 = vmatpush1.msra.mxu0 0.0
    %91 = vmatprep.subr.mxu0 0.0
    %92 = vmatpush1.msra.mxu0 0.0
    %93 = vmatprep.subr.mxu0 %v64
    %94 = vmatpush1.msra.mxu0 %v63
    %95 = vmatprep.subr.mxu0 %v62
    %96 = vmatpush1.msra.mxu0 %v61
    %97 = vmatprep.subr.mxu0 %v60
    %98 = vmatpush1.msra.mxu0 %v59
    %99 = vmatprep.subr.mxu0 %v58
    %100 = vmatpush1.msra.mxu0 %v57
    %101 = vmatprep.subr.mxu0 0.0
    %102 = vmatpush2.msra.mxu0 0.0
    %103 = vmatprep.subr.mxu0 0.0
    %104 = vmatpush2.msra.mxu0 0.0
    %105 = vmatprep.subr.mxu0 0.0
    %106 = vmatpush2.msra.mxu0 0.0
    %107 = vmatprep.subr.mxu0 0.0
    %108 = vmatpush2.msra.mxu0 0.0
    %109 = vmatprep.subr.mxu0 0.0
    %110 = vmatpush2.msra.mxu0 0.0
    %111 = vmatprep.subr.mxu0 0.0
    %112 = vmatpush2.msra.mxu0 0.0
    %113 = vmatprep.subr.mxu0 0.0
    %114 = vmatpush2.msra.mxu0 0.0
    %115 = vmatprep.subr.mxu0 0.0
    %116 = vmatpush2.msra.mxu0 0.0
    %117 = vmatprep.subr.mxu0 0.0
    %118 = vmatpush2.msra.mxu0 0.0
    %119 = vmatprep.subr.mxu0 0.0
    %120 = vmatpush2.msra.mxu0 0.0
    %121 = vmatprep.subr.mxu0 0.0
    %122 = vmatpush2.msra.mxu0 0.0
    %123 = vmatprep.subr.mxu0 0.0
    %124 = vmatpush2.msra.mxu0 0.0
    %125 = vmatprep.subr.mxu0 0.0
    %126 = vmatpush2.msra.mxu0 0.0
    %127 = vmatprep.subr.mxu0 0.0
    %128 = vmatpush2.msra.mxu0 0.0
    %129 = vmatprep.subr.mxu0 0.0
    %130 = vmatpush2.msra.mxu0 0.0
    %131 = vmatprep.subr.mxu0 0.0
    %132 = vmatpush2.msra.mxu0 0.0
    %133 = vmatprep.mubr.f32.mxu0 0.0
    %134 = vmatmul.mubr.f32.gmra.mxu0 %v67
    %v135 = vpop.f32.mrf.mxu0
    %v136 = vadd.f32 0.0, %v135
    %v137 = vpop.f32.mrf.mxu0
    %v138 = vadd.f32 0.0, %v137
    %139 = vdwg.mxu0
    %v140 = vld [vmem:[#allocation2] sm:$0x3]
    %v141 = vld [vmem:[#allocation7] sm:$0xff]
    %v142 = vld [vmem:[#allocation7 + $0x8] sm:$0xff]
    %v143 = vld [vmem:[#allocation7 + $0x10] sm:$0xff]
    %v144 = vld [vmem:[#allocation7 + $0x18] sm:$0xff]
    %v145 = vld [vmem:[#allocation7 + $0x20] sm:$0xff]
    %v146 = vld [vmem:[#allocation7 + $0x28] sm:$0xff]
    %v147 = vld [vmem:[#allocation7 + $0x30] sm:$0xff]
    %v148 = vld [vmem:[#allocation7 + $0x38] sm:$0xff]
    %v149 = vld [vmem:[#allocation7 + $0x40] sm:$0xff]
    %v150 = vld [vmem:[#allocation7 + $0x48] sm:$0xff]
    %v151 = vld [vmem:[#allocation7 + $0x50] sm:$0xff]
    %v152 = vld [vmem:[#allocation7 + $0x58] sm:$0xff]
    %v153 = vld [vmem:[#allocation7 + $0x60] sm:$0xff]
    %v154 = vld [vmem:[#allocation7 + $0x68] sm:$0xff]
    %v155 = vld [vmem:[#allocation7 + $0x70] sm:$0xff]
    %v156 = vld [vmem:[#allocation7 + $0x78] sm:$0xff]
    %v157 = vld [vmem:[#allocation7 + $0x80] sm:$0xff]
    %v158 = vld [vmem:[#allocation7 + $0x88] sm:$0xff]
    %v159 = vld [vmem:[#allocation7 + $0x90] sm:$0xff]
    %v160 = vld [vmem:[#allocation7 + $0x98] sm:$0xff]
    %v161 = vld [vmem:[#allocation7 + $0xa0] sm:$0xff]
    %v162 = vld [vmem:[#allocation7 + $0xa8] sm:$0xff]
    %v163 = vld [vmem:[#allocation7 + $0xb0] sm:$0xff]
    %v164 = vld [vmem:[#allocation7 + $0xb8] sm:$0xff]
    %v165 = vld [vmem:[#allocation7 + $0xc0] sm:$0xff]
    %v166 = vld [vmem:[#allocation7 + $0xc8] sm:$0xff]
    %v167 = vld [vmem:[#allocation7 + $0xd0] sm:$0xff]
    %v168 = vld [vmem:[#allocation7 + $0xd8] sm:$0xff]
    %v169 = vld [vmem:[#allocation7 + $0xe0] sm:$0xff]
    %v170 = vld [vmem:[#allocation7 + $0xe8] sm:$0xff]
    %v171 = vld [vmem:[#allocation7 + $0xf0] sm:$0xff]
    %v172 = vld [vmem:[#allocation7 + $0xf8] sm:$0xff]
    %v173 = vld [vmem:[#allocation7 + $0x100] sm:$0xff]
    %v174 = vld [vmem:[#allocation7 + $0x108] sm:$0xff]
    %v175 = vld [vmem:[#allocation7 + $0x110] sm:$0xff]
    %v176 = vld [vmem:[#allocation7 + $0x118] sm:$0xff]
    %v177 = vld [vmem:[#allocation7 + $0x120] sm:$0xff]
    %v178 = vld [vmem:[#allocation7 + $0x128] sm:$0xff]
    %v179 = vld [vmem:[#allocation7 + $0x130] sm:$0xff]
    %v180 = vld [vmem:[#allocation7 + $0x138] sm:$0xff]
    %v181 = vld [vmem:[#allocation7 + $0x140] sm:$0xff]
    %v182 = vld [vmem:[#allocation7 + $0x148] sm:$0xff]
    %v183 = vld [vmem:[#allocation7 + $0x150] sm:$0xff]
    %v184 = vld [vmem:[#allocation7 + $0x158] sm:$0xff]
    %v185 = vld [vmem:[#allocation7 + $0x160] sm:$0xff]
    %v186 = vld [vmem:[#allocation7 + $0x168] sm:$0xff]
    %v187 = vld [vmem:[#allocation7 + $0x170] sm:$0xff]
    %v188 = vld [vmem:[#allocation7 + $0x178] sm:$0xff]
    %v189 = vld [vmem:[#allocation7 + $0x180] sm:$0xff]
    %v190 = vld [vmem:[#allocation7 + $0x188] sm:$0xff]
    %v191 = vld [vmem:[#allocation7 + $0x190] sm:$0xff]
    %v192 = vld [vmem:[#allocation7 + $0x198] sm:$0xff]
    %v193 = vld [vmem:[#allocation7 + $0x1a0] sm:$0xff]
    %v194 = vld [vmem:[#allocation7 + $0x1a8] sm:$0xff]
    %v195 = vld [vmem:[#allocation7 + $0x1b0] sm:$0xff]
    %v196 = vld [vmem:[#allocation7 + $0x1b8] sm:$0xff]
    %v197 = vld [vmem:[#allocation7 + $0x1c0] sm:$0xff]
    %v198 = vld [vmem:[#allocation7 + $0x1c8] sm:$0xff]
    %v199 = vld [vmem:[#allocation7 + $0x1d0] sm:$0xff]
    %v200 = vld [vmem:[#allocation7 + $0x1d8] sm:$0xff]
    %v201 = vld [vmem:[#allocation7 + $0x1e0] sm:$0xff]
    %v202 = vld [vmem:[#allocation7 + $0x1e8] sm:$0xff]
    %v203 = vld [vmem:[#allocation7 + $0x1f0] sm:$0xff]
    %v204 = vld [vmem:[#allocation7 + $0x1f8] sm:$0xff]
    %205 = vmatprep.subr.mxu0 %v172
    %206 = vmatpush1.msra.mxu0 %v171
    %207 = vmatprep.subr.mxu0 %v170
    %208 = vmatpush1.msra.mxu0 %v169
    %209 = vmatprep.subr.mxu0 %v168
    %210 = vmatpush1.msra.mxu0 %v167
    %211 = vmatprep.subr.mxu0 %v166
    %212 = vmatpush1.msra.mxu0 %v165
    %213 = vmatprep.subr.mxu0 %v164
    %214 = vmatpush1.msra.mxu0 %v163
    %215 = vmatprep.subr.mxu0 %v162
    %216 = vmatpush1.msra.mxu0 %v161
    %217 = vmatprep.subr.mxu0 %v160
    %218 = vmatpush1.msra.mxu0 %v159
    %219 = vmatprep.subr.mxu0 %v158
    %220 = vmatpush1.msra.mxu0 %v157
    %221 = vmatprep.subr.mxu0 %v156
    %222 = vmatpush1.msra.mxu0 %v155
    %223 = vmatprep.subr.mxu0 %v154
    %224 = vmatpush1.msra.mxu0 %v153
    %225 = vmatprep.subr.mxu0 %v152
    %226 = vmatpush1.msra.mxu0 %v151
    %227 = vmatprep.subr.mxu0 %v150
    %228 = vmatpush1.msra.mxu0 %v149
    %229 = vmatprep.subr.mxu0 %v148
    %230 = vmatpush1.msra.mxu0 %v147
    %231 = vmatprep.subr.mxu0 %v146
    %232 = vmatpush1.msra.mxu0 %v145
    %233 = vmatprep.subr.mxu0 %v144
    %234 = vmatpush1.msra.mxu0 %v143
    %235 = vmatprep.subr.mxu0 %v142
    %236 = vmatpush1.msra.mxu0 %v141
    %237 = vmatprep.subr.mxu0 %v204
    %238 = vmatpush2.msra.mxu0 %v203
    %239 = vmatprep.subr.mxu0 %v202
    %240 = vmatpush2.msra.mxu0 %v201
    %241 = vmatprep.subr.mxu0 %v200
    %242 = vmatpush2.msra.mxu0 %v199
    %243 = vmatprep.subr.mxu0 %v198
    %244 = vmatpush2.msra.mxu0 %v197
    %245 = vmatprep.subr.mxu0 %v196
    %246 = vmatpush2.msra.mxu0 %v195
    %247 = vmatprep.subr.mxu0 %v194
    %248 = vmatpush2.msra.mxu0 %v193
    %249 = vmatprep.subr.mxu0 %v192
    %250 = vmatpush2.msra.mxu0 %v191
    %251 = vmatprep.subr.mxu0 %v190
    %252 = vmatpush2.msra.mxu0 %v189
    %253 = vmatprep.subr.mxu0 %v188
    %254 = vmatpush2.msra.mxu0 %v187
    %255 = vmatprep.subr.mxu0 %v186
    %256 = vmatpush2.msra.mxu0 %v185
    %257 = vmatprep.subr.mxu0 %v184
    %258 = vmatpush2.msra.mxu0 %v183
    %259 = vmatprep.subr.mxu0 %v182
    %260 = vmatpush2.msra.mxu0 %v181
    %261 = vmatprep.subr.mxu0 %v180
    %262 = vmatpush2.msra.mxu0 %v179
    %263 = vmatprep.subr.mxu0 %v178
    %264 = vmatpush2.msra.mxu0 %v177
    %265 = vmatprep.subr.mxu0 %v176
    %266 = vmatpush2.msra.mxu0 %v175
    %267 = vmatprep.subr.mxu0 %v174
    %268 = vmatpush2.msra.mxu0 %v173
    %269 = vmatprep.mubr.f32.mxu0 %v138
    %270 = vmatmul.mubr.f32.gmra.mxu0 %v136
    %v271 = vpop.f32.mrf.mxu0
    %v272 = vadd.f32 0.0, %v271
    %v273 = vpop.f32.mrf.mxu0
    %v274 = vadd.f32 0.0, %v273
    %275 = vdwg.mxu0
    %v278 = vcombine.low %v272, %v274
    %v280 = vunpack.c.l.s4 1966171168
    %v281 = vunpack.c.0.s8 %v280
    %v282 = vlaneseq
    %v283 = vshrl.u32 %v282, 7
    %v284 = vsub.s32 %v281, %v283
    %v285 = vrot.slane %v278, %v284
    %v287 = vunpack.c.l.s4 1966171168
    %v288 = vunpack.c.0.s8 %v287
    %v289 = vlaneseq
    %v290 = vshrl.u32 %v289, 7
    %v291 = vsub.s32 %v288, %v290
    %v292 = vrot.slane %v285, %v291
    %v294 = vadd.f32 %v140, %v292
    %v295 = vlaneseq
    %vm296 = vcmp.ge.s32.totalorder %v295, 0
    %vm297 = vcmp.lt.s32.totalorder %v295, 256
    %vm298 = vmand %vm296, %vm297
    %299 = vst.msk [vmem:[#allocation2] sm:$0x3] %vm298, %v294
    // Predicated region
    $region30: #{tpu_custom_call.1} parent=1 // pred_check
      %p300 = pneg %p47
    $region31: #{tpu_custom_call.1} parent=1 // pred_check_branch
      %302 = sbr.rel (%p300) target = $region33
    $region32: #{tpu_custom_call.1} parent=1 // pred_region
      %v303 = vld [vmem:[#allocation2] sm:$0x3]
      %s304 = sld [smem:[#allocation3]]
      %v305 = vstv %s304
      %v306 = vadd.f32 %v303, %v305
      %307 = vst.msk [vmem:[#allocation9] sm:$0x3] %vm298, %v306
    $region33: #{tpu_custom_call.1} parent=1 // pred_fallthru
      _
    // Predicated region
    $region34: #{tpu_custom_call.1} parent=1 // pred_check
      _
    $region35: #{tpu_custom_call.1} parent=1 // pred_check_branch
      %309 = sbr.rel (0) target = $region37
    $region36: #{tpu_custom_call.1} parent=1 // pred_region
      %s311 = ssub.s32 32, 32
      %312 = vsyncadd [#allocation6], %s311
      %s314 = sshll.u32 [#allocation9], 4
      %s315 = int_to_ptr.vmem [resolvable:$true] %s314
      %317 = dma.vmem_to_hbm [thread:$0]  %s315, 32, %s4, [#allocation6]
    $region37: #{tpu_custom_call.1} parent=1 // pred_fallthru
      _
    // Predicated region
    $region38: #{tpu_custom_call.1} parent=1 // pred_check
      _
    $region39: #{tpu_custom_call.1} parent=1 // pred_check_branch
      %319 = sbr.rel (0) target = $region41
    $region40: #{tpu_custom_call.1} parent=1 // pred_region
      %320 = dma.done [#allocation6], 32
    $region41: #{tpu_custom_call.1} parent=1 // pred_fallthru
      _
    %321 = vsyncpa [#allocation5], 1
    %322 = vsyncpa [#allocation8], 1
    %323 = vsyncpa [#allocation6], 1

</llo_original>
